<compile_context>
chip_gen: v5e
topology: v5e:2x2
jax: 0.10.0
libtpu: 0.0.40
codegen_flags: <defaults>
</compile_context>

<pallas_src>
import functools

import jax
import jax.numpy as jnp
from jax.experimental import pallas as pl
from jax.experimental.pallas import tpu as pltpu


def _round_up(v, m):
    return ((v + m - 1) // m) * m


def _ce_partial_kernel(x_ref, lab_ref, out_ref, *, n_total, block_rows):
    # x_ref:   (TN, C) logits, native dtype (upcast to f32 in VMEM)
    # lab_ref: (TN, 1) int32 class indices
    # out_ref: (1, 8, 128) f32; partial NLL sum written at [0, 0, 0], zeros elsewhere
    x = x_ref[...].astype(jnp.float32)
    tn, c = x.shape

    # Fused stable logsumexp + label pick (no full [TN, C] log-probs tile).
    m = jnp.max(x, axis=-1, keepdims=True)                           # (TN, 1)
    lse = jnp.log(jnp.sum(jnp.exp(x - m), axis=-1, keepdims=True))   # (TN, 1)

    cls_ids = jax.lax.broadcasted_iota(jnp.int32, (tn, c), 1)
    onehot = (cls_ids == lab_ref[...]).astype(jnp.float32)           # (TN, C)
    picked = jnp.sum(onehot * x, axis=-1, keepdims=True)             # (TN, 1)

    nll = (m + lse) - picked                                         # (TN, 1)

    # Mask rows past the true batch size (grid-edge padding may be garbage/NaN).
    local_rows = jax.lax.broadcasted_iota(jnp.int32, (tn, 1), 0)
    global_rows = pl.program_id(0) * block_rows + local_rows
    nll = jnp.where(global_rows < n_total, nll, 0.0)

    partial = jnp.sum(nll)

    # Aligned (8, 128) output slab: scalar partial at [0, 0], zeros elsewhere.
    r = jax.lax.broadcasted_iota(jnp.int32, (8, 128), 0)
    l = jax.lax.broadcasted_iota(jnp.int32, (8, 128), 1)
    out_ref[...] = jnp.where((r == 0) & (l == 0), partial, 0.0)[None]


def class_loss(x, label, *, block_rows=None):
    """Pallas TPU equivalent of ClassLoss.forward (CrossEntropyLoss, mean).

    x:     [N, C] logits (any float dtype; kept native over HBM)
    label: [N] integer class indices
    """
    # TODO(synk): PyTorch's ignore_index=-100 is not handled (module uses defaults
    # with in-range labels, so it never triggers here).
    n, c = x.shape
    lab2d = label.astype(jnp.int32).reshape(n, 1)

    if block_rows is None:
        # Size the row tile from a VMEM budget: ~4 MiB per logits block
        # (x2 for double-buffering ~= 8 MiB), safe on v5e/v6e/v7x scoped limits
        # and large enough (>= ~256 KiB) to approach the HBM roofline.
        bytes_per_row = c * jnp.dtype(x.dtype).itemsize
        rows_fit = max(8, (4 * 1024 * 1024) // max(bytes_per_row, 1))
        block_rows = min(_round_up(n, 8), (rows_fit // 8) * 8, 8192)
    block_rows = max(8, (block_rows // 8) * 8)
    grid_n = pl.cdiv(n, block_rows)

    kernel = functools.partial(
        _ce_partial_kernel, n_total=n, block_rows=block_rows
    )

    partials = pl.pallas_call(
        kernel,
        out_shape=jax.ShapeDtypeStruct((grid_n, 8, 128), jnp.float32),
        grid=(grid_n,),
        in_specs=[
            pl.BlockSpec((block_rows, c), lambda i: (i, 0)),
            pl.BlockSpec((block_rows, 1), lambda i: (i, 0)),
        ],
        out_specs=pl.BlockSpec((1, 8, 128), lambda i: (i, 0, 0)),
        compiler_params=pltpu.CompilerParams(
            dimension_semantics=("parallel",),
            vmem_limit_bytes=32 * 1024 * 1024,
        ),
    )(x, lab2d)

    # Tiny reduction over per-tile partials; divide by the TRUE N exactly once.
    return jnp.sum(partials) / jnp.float32(n)


def _reference(x, label):
    logp = jax.nn.log_softmax(x.astype(jnp.float32), axis=-1)
    return -jnp.mean(jnp.take_along_axis(logp, label[:, None], axis=-1))


if __name__ == "__main__":
    key = jax.random.PRNGKey(0)
    kx, kl = jax.random.split(key)

    # Case 1: small f32 logits (matches the original module usage).
    N, C = 8, 32
    x = jax.random.normal(kx, (N, C), dtype=jnp.float32)
    label = jax.random.randint(kl, (N,), 0, C, dtype=jnp.int32)

    loss = class_loss(x, label)
    jax.block_until_ready(loss)
    ref = _reference(x, label)
    assert jnp.allclose(loss, ref, atol=1e-5, rtol=1e-5), (loss, ref)

    # Case 2: multi-tile grid with a ragged remainder + bf16-over-HBM path.
    kx2, kl2 = jax.random.split(jax.random.PRNGKey(1))
    N2, C2 = 20, 32
    x2 = jax.random.normal(kx2, (N2, C2), dtype=jnp.float32).astype(jnp.bfloat16)
    label2 = jax.random.randint(kl2, (N2,), 0, C2, dtype=jnp.int32)

    loss2 = class_loss(x2, label2, block_rows=8)  # forces 3 tiles, 4 padded rows
    jax.block_until_ready(loss2)
    ref2 = _reference(x2, label2)
    assert jnp.allclose(loss2, ref2, atol=1e-4, rtol=1e-4), (loss2, ref2)

    print("KERNEL_OK")
</pallas_src>

<mosaic_0001>
module attributes {stable_mosaic.version = 11 : i64} {
  func.func @_ce_partial_kernel(%arg0: i32, %arg1: memref<8x32xf32, #tpu.memory_space<vmem>>, %arg2: memref<8x1xi32, #tpu.memory_space<vmem>>, %arg3: memref<1x8x128xf32, #tpu.memory_space<vmem>>) attributes {dimension_semantics = [#tpu.dimension_semantics<parallel>], iteration_bounds = array<i64: 1>, scalar_prefetch = 0 : i64, scratch_operands = 0 : i64, tpu.core_type = #tpu.core_type<tc>, window_params = [{transform_indices = @transform_0, window_bounds = array<i64: 8, 32>}, {transform_indices = @transform_1, window_bounds = array<i64: 8, 1>}, {transform_indices = @transform_2, window_bounds = array<i64: 1, 8, 128>}]} {
    %c0 = arith.constant 0 : index
    %c0_0 = arith.constant 0 : index
    %0 = vector.load %arg1[%c0, %c0_0] : memref<8x32xf32, #tpu.memory_space<vmem>>, vector<8x32xf32>
    %cst = arith.constant dense<0xFF800000> : vector<8xf32>
    %1 = vector.multi_reduction <maximumf>, %0, %cst [1] : vector<8x32xf32> to vector<8xf32>
    %2 = vector.shape_cast %1 : vector<8xf32> to vector<8x1xf32>
    %3 = vector.broadcast %2 : vector<8x1xf32> to vector<8x32xf32>
    %4 = arith.subf %0, %3 : vector<8x32xf32>
    %5 = math.exp %4 : vector<8x32xf32>
    %cst_1 = arith.constant dense<0.000000e+00> : vector<8xf32>
    %6 = vector.multi_reduction <add>, %5, %cst_1 [1] : vector<8x32xf32> to vector<8xf32>
    %7 = vector.shape_cast %6 : vector<8xf32> to vector<8x1xf32>
    %8 = math.log %7 : vector<8x1xf32>
    %9 = tpu.iota {dimensions = array<i32: 1>} : vector<8x32xi32>
    %c0_2 = arith.constant 0 : index
    %c0_3 = arith.constant 0 : index
    %10 = vector.load %arg2[%c0_2, %c0_3] : memref<8x1xi32, #tpu.memory_space<vmem>>, vector<8x1xi32>
    %11 = vector.broadcast %10 : vector<8x1xi32> to vector<8x32xi32>
    %12 = arith.cmpi eq, %9, %11 : vector<8x32xi32>
    %13 = arith.extui %12 : vector<8x32xi1> to vector<8x32xi32>
    %14 = arith.sitofp %13 : vector<8x32xi32> to vector<8x32xf32>
    %15 = arith.mulf %14, %0 : vector<8x32xf32>
    %cst_4 = arith.constant dense<0.000000e+00> : vector<8xf32>
    %16 = vector.multi_reduction <add>, %15, %cst_4 [1] : vector<8x32xf32> to vector<8xf32>
    %17 = vector.shape_cast %16 : vector<8xf32> to vector<8x1xf32>
    %18 = arith.addf %2, %8 : vector<8x1xf32>
    %19 = arith.subf %18, %17 : vector<8x1xf32>
    %20 = tpu.iota {dimensions = array<i32: 0>} : vector<8x1xi32>
    %c8_i32 = arith.constant 8 : i32
    %21 = arith.muli %arg0, %c8_i32 : i32
    %22 = vector.broadcast %21 : i32 to vector<8x1xi32>
    %23 = arith.addi %22, %20 : vector<8x1xi32>
    %c8_i32_5 = arith.constant 8 : i32
    %24 = vector.broadcast %c8_i32_5 : i32 to vector<8x1xi32>
    %25 = arith.cmpi slt, %23, %24 : vector<8x1xi32>
    %cst_6 = arith.constant 0.000000e+00 : f32
    %26 = vector.broadcast %cst_6 : f32 to vector<8x1xf32>
    %27 = arith.select %25, %19, %26 : vector<8x1xi1>, vector<8x1xf32>
    %28 = vector.shape_cast %27 : vector<8x1xf32> to vector<1x8x1xf32>
    %cst_7 = arith.constant dense<0.000000e+00> : vector<1xf32>
    %29 = vector.multi_reduction <add>, %28, %cst_7 [1, 2] : vector<1x8x1xf32> to vector<1xf32>
    %30 = vector.shape_cast %29 : vector<1xf32> to vector<1x1x1xf32>
    %31 = vector.extract %30[0, 0, 0] : f32 from vector<1x1x1xf32>
    %32 = tpu.iota {dimensions = array<i32: 0>} : vector<8x128xi32>
    %33 = tpu.iota {dimensions = array<i32: 1>} : vector<8x128xi32>
    %c0_i32 = arith.constant 0 : i32
    %34 = vector.broadcast %c0_i32 : i32 to vector<8x128xi32>
    %35 = arith.cmpi eq, %32, %34 : vector<8x128xi32>
    %c0_i32_8 = arith.constant 0 : i32
    %36 = vector.broadcast %c0_i32_8 : i32 to vector<8x128xi32>
    %37 = arith.cmpi eq, %33, %36 : vector<8x128xi32>
    %38 = arith.andi %35, %37 : vector<8x128xi1>
    %cst_9 = arith.constant 0.000000e+00 : f32
    %39 = vector.broadcast %31 : f32 to vector<8x128xf32>
    %40 = vector.broadcast %cst_9 : f32 to vector<8x128xf32>
    %41 = arith.select %38, %39, %40 : vector<8x128xi1>, vector<8x128xf32>
    %42 = vector.shape_cast %41 : vector<8x128xf32> to vector<1x8x128xf32>
    %c0_10 = arith.constant 0 : index
    %c0_11 = arith.constant 0 : index
    %c0_12 = arith.constant 0 : index
    %43 = vector.load %arg3[%c0_10, %c0_11, %c0_12] : memref<1x8x128xf32, #tpu.memory_space<vmem>>, vector<1x8x128xf32>
    tpu.vector_store %arg3[%c0_10, %c0_11, %c0_12], %42 {strides = array<i32>} : memref<1x8x128xf32, #tpu.memory_space<vmem>>, vector<1x8x128xf32>,
    return
  }
  func.func @transform_0(%arg0: i32) -> (i32, i32) {
    %c0_i32 = arith.constant 0 : i32
    %c0_i32_0 = arith.constant 0 : i32
    return %arg0, %c0_i32 : i32, i32
  }
  func.func @transform_1(%arg0: i32) -> (i32, i32) {
    %c0_i32 = arith.constant 0 : i32
    %c0_i32_0 = arith.constant 0 : i32
    return %arg0, %c0_i32 : i32, i32
  }
  func.func @transform_2(%arg0: i32) -> (i32, i32, i32) {
    %c0_i32 = arith.constant 0 : i32
    %c0_i32_0 = arith.constant 0 : i32
    %c0_i32_1 = arith.constant 0 : i32
    return %arg0, %c0_i32, %c0_i32_0 : i32, i32, i32
  }
}

</mosaic_0001>

<llo_original>
// kernel: tpu_custom_call.1
$region0: #{tpu_custom_call.1}
  #allocation0 [shape = 'u32[]', space=smem, size = 0x4, offset = 0x4, fixed_abs, tag = 'smem constant byte address 0x4 - core index']
  #allocation1 [shape = 'u32[72,128]{1,0:T(1,128)}', space=vmem, size = 0x9000, scoped, tag = 'internal scratch']
  %s0 = inlined_call_operand.vmem [shape: f32[8,32], index: 0, kind: input, shape index: {}]
  %s1 = inlined_call_operand.vmem [shape: s32[8,1], index: 1, kind: input, shape index: {}]
  %s2 = inlined_call_operand.hbm [shape: f32[1,8,128], index: 2, kind: output, shape index: {}]
  %s3 = sld [smem:[#allocation0]]
  $region18: #{tpu_custom_call.1} parent=0
    _
  %s5 = ssub.s32 1, %s3
  %s6 = scalar_select 0, %s5, %s3
  $region1: #{tpu_custom_call.1} parent=0
    #allocation2 [shape = 'u8[4096]{0}', space=vmem, size = 0x1000, scoped, tag = 'output window, operand 0, single buffered']
    #allocation3 [shape = 's32[1]{0}', space=sflag, size = 0x4, scoped, tag = 'scoped memory for tpu_custom_call.1']
    %7 = vsyncpa [#allocation3], 0
    // Predicated region
    $region2: #{tpu_custom_call.1} parent=1 // pred_check
      _
    $region3: #{tpu_custom_call.1} parent=1 // pred_check_branch
      %9 = sbr.rel (0) target = $region5
    $region4: #{tpu_custom_call.1} parent=1 // pred_region
      _
    $region5: #{tpu_custom_call.1} parent=1 // pred_fallthru
      _
    // Predicated region
    $region6: #{tpu_custom_call.1} parent=1 // pred_check
      _
    $region7: #{tpu_custom_call.1} parent=1 // pred_check_branch
      %11 = sbr.rel (0) target = $region9
    $region8: #{tpu_custom_call.1} parent=1 // pred_region
      _
    $region9: #{tpu_custom_call.1} parent=1 // pred_fallthru
      _
    %v12 = vld [vmem:[%s0] sm:$0xff]
    %vm13 = vcmask 261120
    %v14 = vsel %vm13, %v12, -inf
    %15 = vmax.xlane.f32.xlu0 %v14
    %v16 = vpop.xlane.xlu0 %15
    %v17 = vsub.f32 %v12, %v16
    %v18 = vmul.f32 %v17, 1.442695
    %v19 = vpow.pop %v18
    %v20 = vsel %vm13, %v19, 0.0
    %21 = vadd.xlane.f32.xlu0 %v20
    %v22 = vpop.xlane.xlu0 %21
    %v23 = vlog2.pop %v22
    %v24 = vmul.f32 %v23, 0.6931472
    %v25 = vlaneseq
    %v26 = vand.u32 %v25, 127
    %v27 = vld [vmem:[%s1] sm:$0xff]
    %28 = vset.pattern.permute.xlu0 0
    %29 = vperm.xlu0 %28, %v27
    %v30 = vpop.permute.xlu0 %29
    %vm31 = vcmp.eq.s32.totalorder %v26, %v30
    %v32 = vsel %vm31, 1, 0
    %v33 = vcvt.s32.f32 %v32
    %v34 = vmul.f32 %v33, %v12
    %v35 = vsel %vm13, %v34, 0.0
    %36 = vadd.xlane.f32.xlu0 %v35
    %v37 = vpop.xlane.xlu0 %36
    %v38 = vadd.f32 %v16, %v24
    %v39 = vsub.f32 %v38, %v37
    %v40 = vlaneseq
    %v41 = vshrl.u32 %v40, 7
    %s42 = smul.u32 0, 8
    %v43 = vstv %s42
    %v44 = vadd.s32 %v43, %v41
    %vm45 = vcmp.lt.s32.totalorder %v44, 8
    %v46 = vsel %vm45, %v39, 0.0
    %vm47 = vcmask 7168
    %v48 = vsel %vm47, %v46, 0.0
    %49 = vadd.xlane.f32.xlu0 %v48
    %v50 = vpop.xlane.xlu0 %49
    %v51 = vrot.slane %v50, 4
    %v52 = vadd.f32 %v50, %v51
    %v53 = vrot.slane %v52, 2
    %v54 = vadd.f32 %v52, %v53
    %v55 = vrot.slane %v54, 1
    %v56 = vadd.f32 %v54, %v55
    %s57 = vtos %v56
    %vm58 = vcmp.eq.s32.totalorder %v41, 0
    %vm59 = vcmp.eq.s32.totalorder %v26, 0
    %vm60 = vmand %vm58, %vm59
    %v61 = vstv %s57
    %v62 = vsel %vm60, %v61, 0.0
    %63 = vst [vmem:[#allocation2] sm:$0xff] %v62
    // Predicated region
    $region10: #{tpu_custom_call.1} parent=1 // pred_check
      _
    $region11: #{tpu_custom_call.1} parent=1 // pred_check_branch
      %65 = sbr.rel (0) target = $region13
    $region12: #{tpu_custom_call.1} parent=1 // pred_region
      %67 = vsyncadd [#allocation3], 0
      %s69 = sshll.u32 [#allocation2], 4
      %s70 = int_to_ptr.vmem [resolvable:$true] %s69
      %s71 = sshll.u32 %s2, 4
      %s72 = int_to_ptr.hbm [resolvable:$true] %s71
      %74 = dma.vmem_to_hbm [thread:$0]  %s70, 128, %s72, [#allocation3]
    $region13: #{tpu_custom_call.1} parent=1 // pred_fallthru
      _
    // Predicated region
    $region14: #{tpu_custom_call.1} parent=1 // pred_check
      _
    $region15: #{tpu_custom_call.1} parent=1 // pred_check_branch
      %76 = sbr.rel (0) target = $region17
    $region16: #{tpu_custom_call.1} parent=1 // pred_region
      %78 = dma.done [#allocation3], 128
    $region17: #{tpu_custom_call.1} parent=1 // pred_fallthru
      _
    %79 = vsyncpa [#allocation3], 1

</llo_original>
